<compile_context>
chip_gen: v7x
topology: tpu7x:2x2x1
jax: 0.10.0
libtpu: 0.0.40
codegen_flags: <defaults>
</compile_context>

<pallas_src>
import functools

import jax
import jax.numpy as jnp
from jax.experimental import pallas as pl
from jax.experimental.pallas import tpu as pltpu


def _load_block(x_ref, y_ref, w_ref, block_index, batch_size, need_mask):
    """Load one (TB, D) block, cast to f32, zero out rows past the true B."""
    x = x_ref[...].astype(jnp.float32)
    y = y_ref[...].astype(jnp.float32)
    w = w_ref[...].astype(jnp.float32)
    if need_mask:
        tb = x_ref.shape[0]
        row = jax.lax.broadcasted_iota(jnp.int32, (tb, 1), 0)
        valid = (block_index * tb + row) < batch_size        # (TB, 1) bool
        x = jnp.where(valid, x, 0.0)
        y = jnp.where(valid, y, 0.0)
        w = jnp.where(valid, w, 0.0)
    return x, y, w


def _finalize_and_store(out_ref, g, sum_x, sum_wx, sum_wxx, sum_d2, v1, v2, *,
                        batch_size, num_features, sim_coeff, std_coeff,
                        cov_coeff):
    """All cross-lane / scalar math, done exactly once."""
    d = g.shape[1]
    B = jnp.float32(batch_size)
    mean = sum_x / B                                          # (1, D)

    # weighted variance of the centered features (the reference's inner
    # re-centering subtracts an ~0 mean; dropping it is analytically exact):
    #   sum_i w_i (x_ij - m_j)^2 = S_wxx - 2 m S_wx + v1 m^2
    scale = v1 / (v1 * v1 - v2)
    wvar = scale * (sum_wxx - 2.0 * mean * sum_wx + (v1 * mean) * mean)
    std_x = jnp.sqrt(wvar + 0.001)
    # std_y == std_x (reference gathers x into y) -> the two mean/2 halves
    # collapse to a single mean over features.
    std_loss = jnp.sum(jnp.maximum(1.0 - std_x, 0.0)) / jnp.float32(d)

    # cov = (G - B m^T m) / (B - 1); Frobenius norm and diagonal without
    # materializing the centered outer product.
    inv_bm1 = 1.0 / (B - 1.0)
    sum_g_sq = jnp.sum(g * g)
    mg = jnp.dot(mean, g, preferred_element_type=jnp.float32)  # (1, D)
    m_g_m = jnp.sum(mg * mean)
    sum_m_sq = jnp.sum(mean * mean)
    cov_fro_sq = (sum_g_sq - 2.0 * B * m_g_m
                  + (B * B) * sum_m_sq * sum_m_sq) * inv_bm1 * inv_bm1
    # diag(G)_j = sum_i x_ij^2, extracted once from the Gram accumulator.
    ri = jax.lax.broadcasted_iota(jnp.int32, g.shape, 0)
    ci = jax.lax.broadcasted_iota(jnp.int32, g.shape, 1)
    diag_g = jnp.sum(jnp.where(ri == ci, g, 0.0), axis=0, keepdims=True)
    diag_cov = (diag_g - B * mean * mean) * inv_bm1            # (1, D)
    offdiag_sq = cov_fro_sq - jnp.sum(diag_cov * diag_cov)
    # cov_y == cov_x -> factor of 2 instead of a second Gram pass.
    cov_loss = 2.0 * offdiag_sq / jnp.float32(num_features)

    repr_loss = sum_d2 / (B * jnp.float32(d))

    out_ref[0, 0] = (sim_coeff * repr_loss
                     + std_coeff * std_loss
                     + cov_coeff * cov_loss)


def _vicreg_single_kernel(x_ref, y_ref, w_ref, out_ref, *, batch_size,
                          num_features, sim_coeff, std_coeff, cov_coeff,
                          need_mask):
    """Whole batch fits one tile: no scratch, no accumulate path."""
    x, y, w = _load_block(x_ref, y_ref, w_ref, pl.program_id(0),
                          batch_size, need_mask)
    wx = w * x
    diff = x - y
    g = jax.lax.dot_general(x, x, dimension_numbers=(((0,), (0,)), ((), ())),
                            preferred_element_type=jnp.float32)
    _finalize_and_store(
        out_ref, g,
        jnp.sum(x, axis=0, keepdims=True),
        jnp.sum(wx, axis=0, keepdims=True),
        jnp.sum(wx * x, axis=0, keepdims=True),
        jnp.sum(diff * diff),
        jnp.sum(w), jnp.sum(w * w),
        batch_size=batch_size, num_features=num_features,
        sim_coeff=sim_coeff, std_coeff=std_coeff, cov_coeff=cov_coeff)


def _vicreg_stream_kernel(x_ref, y_ref, w_ref, out_ref,
                          acc_g, acc_sx, acc_swx, acc_swxx, acc_sd2,
                          acc_w, acc_w2, *, batch_size, num_features,
                          sim_coeff, std_coeff, cov_coeff, need_mask):
    """Batch streamed over a 1-D 'arbitrary' grid with VMEM accumulators."""
    b = pl.program_id(0)
    nb = pl.num_programs(0)

    @pl.when(b == 0)
    def _init():
        acc_g[...] = jnp.zeros_like(acc_g)
        acc_sx[...] = jnp.zeros_like(acc_sx)
        acc_swx[...] = jnp.zeros_like(acc_swx)
        acc_swxx[...] = jnp.zeros_like(acc_swxx)
        acc_sd2[...] = jnp.zeros_like(acc_sd2)
        acc_w[...] = jnp.zeros_like(acc_w)
        acc_w2[...] = jnp.zeros_like(acc_w2)

    x, y, w = _load_block(x_ref, y_ref, w_ref, b, batch_size, need_mask)

    wx = w * x
    diff = x - y
    # lane-wise partial sums (no cross-lane / scalar reductions per step)
    acc_sx[...] += jnp.sum(x, axis=0, keepdims=True)
    acc_swx[...] += jnp.sum(wx, axis=0, keepdims=True)
    acc_swxx[...] += jnp.sum(wx * x, axis=0, keepdims=True)
    acc_sd2[...] += jnp.sum(diff * diff, axis=0, keepdims=True)
    acc_w[...] += w
    acc_w2[...] += w * w

    # Partial X^T X: contract the batch axis directly on the MXU.
    # (If MLIR shows a per-step vxpose of x feeding the MXU, it is amortized
    #  by the large TB; see the aux-matmul TODO for the compute-bound case.)
    acc_g[...] += jax.lax.dot_general(
        x, x, dimension_numbers=(((0,), (0,)), ((), ())),
        preferred_element_type=jnp.float32)

    @pl.when(b == nb - 1)
    def _fin():
        _finalize_and_store(
            out_ref, acc_g[...], acc_sx[...], acc_swx[...], acc_swxx[...],
            jnp.sum(acc_sd2[...]), jnp.sum(acc_w[...]), jnp.sum(acc_w2[...]),
            batch_size=batch_size, num_features=num_features,
            sim_coeff=sim_coeff, std_coeff=std_coeff, cov_coeff=cov_coeff)


def w_vicreg_loss(x, y, weights, *, num_features=None, sim_coeff=25.0,
                  std_coeff=25.0, cov_coeff=1.0, block_rows=None,
                  vmem_budget_bytes=48 * 2**20):
    """Pallas implementation of W_VICReg.forward (world_size == 1).

    x, y: (B, D) in any float dtype; weights: (B,). num_features defaults to D.
    """
    B, D = x.shape
    if num_features is None:
        num_features = D

    def rup(v, m):
        return ((v + m - 1) // m) * m

    # ---- tile sizing from a VMEM budget (no wrapper-side pad / cast) ----
    d_lanes = rup(D, 128)
    acc_bytes = 4 * rup(D, 8) * d_lanes          # (D, D) f32 Gram accumulator
    acc_bytes += 5 * 4 * 8 * d_lanes             # (1, D) running sums (padded)
    bytes_per_row = 2 * (jnp.dtype(x.dtype).itemsize
                         + jnp.dtype(y.dtype).itemsize) * d_lanes  # 2x buffered
    bytes_per_row += 2 * jnp.dtype(weights.dtype).itemsize * 128 + 2 * 4
    if block_rows is None:
        avail = max(vmem_budget_bytes - acc_bytes, 256 * bytes_per_row)
        tb = min(512, avail // bytes_per_row)
    else:
        tb = int(block_rows)
    tb = min(tb, rup(B, 8))                      # collapse tiny batches
    tb = max(8, (tb // 8) * 8)
    nb = pl.cdiv(B, tb)
    need_mask = (B % tb) != 0                    # ragged last block?

    est_vmem = acc_bytes + tb * bytes_per_row + (2 << 20)
    vmem_limit = int(min(120 * 2**20,
                         max(32 * 2**20, est_vmem + est_vmem // 2)))

    w2d = weights.reshape(B, 1)

    common = dict(batch_size=int(B), num_features=float(num_features),
                  sim_coeff=float(sim_coeff), std_coeff=float(std_coeff),
                  cov_coeff=float(cov_coeff), need_mask=need_mask)

    if nb == 1:
        kernel = functools.partial(_vicreg_single_kernel, **common)
        scratch = []
    else:
        kernel = functools.partial(_vicreg_stream_kernel, **common)
        scratch = [
            pltpu.VMEM((D, D), jnp.float32),     # X^T X accumulator
            pltpu.VMEM((1, D), jnp.float32),     # sum x
            pltpu.VMEM((1, D), jnp.float32),     # sum w*x
            pltpu.VMEM((1, D), jnp.float32),     # sum w*x^2
            pltpu.VMEM((1, D), jnp.float32),     # sum (x - y)^2  (lane-wise)
            pltpu.VMEM((tb, 1), jnp.float32),    # running w   (no per-step reduce)
            pltpu.VMEM((tb, 1), jnp.float32),    # running w^2
        ]

    out = pl.pallas_call(
        kernel,
        out_shape=jax.ShapeDtypeStruct((1, 1), jnp.float32),
        grid_spec=pltpu.PrefetchScalarGridSpec(
            num_scalar_prefetch=0,
            grid=(nb,),
            in_specs=[
                pl.BlockSpec((tb, D), lambda b: (b, 0)),
                pl.BlockSpec((tb, D), lambda b: (b, 0)),
                pl.BlockSpec((tb, 1), lambda b: (b, 0)),
            ],
            out_specs=pl.BlockSpec((1, 1), lambda b: (0, 0),
                                   memory_space=pltpu.SMEM),
            scratch_shapes=scratch,
        ),
        compiler_params=pltpu.CompilerParams(
            dimension_semantics=("arbitrary",),   # batch axis is a reduction
            vmem_limit_bytes=vmem_limit),
    )(x, y, w2d)
    return out[0, 0]


def _reference_loss(x, y, weights, *, num_features, sim_coeff, std_coeff,
                    cov_coeff):
    """Pure-JAX reference mirroring the PyTorch code (world_size == 1)."""
    B, D = x.shape
    repr_loss = jnp.mean((x - y) ** 2)
    x_g = x
    y_g = x  # reproduce original quirk: y = cat(gather(x))
    xc = x_g - x_g.mean(axis=0)
    yc = y_g - y_g.mean(axis=0)
    v1 = weights.sum()
    v2 = (weights ** 2).sum()

    def wvar(z):
        m = z.mean(axis=0)
        return v1 / (v1 ** 2 - v2) * (((z - m) ** 2) * weights[:, None]).sum(0)

    std_x = jnp.sqrt(wvar(xc) + 0.001)
    std_y = jnp.sqrt(wvar(yc) + 0.001)
    std_loss = (jnp.mean(jax.nn.relu(1 - std_x)) / 2
                + jnp.mean(jax.nn.relu(1 - std_y)) / 2)
    cov_x = xc.T @ xc / (B - 1)
    cov_y = yc.T @ yc / (B - 1)

    def offd(c):
        return jnp.sum(c ** 2) - jnp.sum(jnp.diag(c) ** 2)

    cov_loss = offd(cov_x) / num_features + offd(cov_y) / num_features
    return sim_coeff * repr_loss + std_coeff * std_loss + cov_coeff * cov_loss


if __name__ == "__main__":
    B, D = 200, 128   # num_features = 128, matching the module default

    key = jax.random.PRNGKey(0)
    kx, ky, kw = jax.random.split(key, 3)
    x = jax.random.normal(kx, (B, D), dtype=jnp.float32)
    y = jax.random.normal(ky, (B, D), dtype=jnp.float32)
    weights = jax.random.uniform(kw, (B,), dtype=jnp.float32) + 0.5

    ref = _reference_loss(x, y, weights, num_features=D, sim_coeff=25.0,
                          std_coeff=25.0, cov_coeff=1.0)

    # Default (auto) tile: whole batch in one grid step -> no-scratch path.
    loss = jax.block_until_ready(
        w_vicreg_loss(x, y, weights, num_features=D))
    assert jnp.allclose(loss, ref, rtol=1e-3, atol=1e-3), (loss, ref)

    # Smaller tile to exercise the streaming accumulate + ragged-last-block
    # path (4 grid steps, last block has only 8 valid rows).
    loss2 = jax.block_until_ready(
        w_vicreg_loss(x, y, weights, num_features=D, block_rows=64))
    assert jnp.allclose(loss2, ref, rtol=1e-3, atol=1e-3), (loss2, ref)

    print("KERNEL_OK")
</pallas_src>

<mosaic_0001>
module attributes {stable_mosaic.version = 11 : i64} {
  func.func @_vicreg_single_kernel(%arg0: i32, %arg1: memref<200x128xf32, #tpu.memory_space<vmem>>, %arg2: memref<200x128xf32, #tpu.memory_space<vmem>>, %arg3: memref<200x1xf32, #tpu.memory_space<vmem>>, %arg4: memref<1x1xf32, #tpu.memory_space<smem>>) attributes {dimension_semantics = [#tpu.dimension_semantics<arbitrary>], iteration_bounds = array<i64: 1>, scalar_prefetch = 0 : i64, scratch_operands = 0 : i64, tpu.core_type = #tpu.core_type<tc>, window_params = [{transform_indices = @transform_0, window_bounds = array<i64: 200, 128>}, {transform_indices = @transform_1, window_bounds = array<i64: 200, 128>}, {transform_indices = @transform_2, window_bounds = array<i64: 200, 1>}, {transform_indices = @transform_3, window_bounds = array<i64: 1, 1>}]} {
    %c0 = arith.constant 0 : index
    %c0_0 = arith.constant 0 : index
    %0 = vector.load %arg1[%c0, %c0_0] : memref<200x128xf32, #tpu.memory_space<vmem>>, vector<200x128xf32>
    %c0_1 = arith.constant 0 : index
    %c0_2 = arith.constant 0 : index
    %1 = vector.load %arg2[%c0_1, %c0_2] : memref<200x128xf32, #tpu.memory_space<vmem>>, vector<200x128xf32>
    %c0_3 = arith.constant 0 : index
    %c0_4 = arith.constant 0 : index
    %2 = vector.load %arg3[%c0_3, %c0_4] : memref<200x1xf32, #tpu.memory_space<vmem>>, vector<200x1xf32>
    %3 = vector.broadcast %2 : vector<200x1xf32> to vector<200x128xf32>
    %4 = arith.mulf %3, %0 : vector<200x128xf32>
    %5 = arith.subf %0, %1 : vector<200x128xf32>
    %cst = arith.constant dense<0.000000e+00> : vector<128x128xf32>
    %6 = tpu.matmul %0, %0, %cst {dimension_numbers = #tpu.dot_dimension_numbers<[0], [0], [1], [1], [0, 1, 1, 1], [], []>} : vector<200x128xf32>, vector<200x128xf32>, vector<128x128xf32> -> vector<128x128xf32>
    %cst_5 = arith.constant dense<0.000000e+00> : vector<128xf32>
    %7 = vector.multi_reduction <add>, %0, %cst_5 [0] : vector<200x128xf32> to vector<128xf32>
    %8 = vector.shape_cast %7 : vector<128xf32> to vector<1x128xf32>
    %cst_6 = arith.constant dense<0.000000e+00> : vector<128xf32>
    %9 = vector.multi_reduction <add>, %4, %cst_6 [0] : vector<200x128xf32> to vector<128xf32>
    %10 = vector.shape_cast %9 : vector<128xf32> to vector<1x128xf32>
    %11 = arith.mulf %4, %0 : vector<200x128xf32>
    %cst_7 = arith.constant dense<0.000000e+00> : vector<128xf32>
    %12 = vector.multi_reduction <add>, %11, %cst_7 [0] : vector<200x128xf32> to vector<128xf32>
    %13 = vector.shape_cast %12 : vector<128xf32> to vector<1x128xf32>
    %14 = arith.mulf %5, %5 : vector<200x128xf32>
    %15 = vector.shape_cast %14 : vector<200x128xf32> to vector<1x200x128xf32>
    %cst_8 = arith.constant dense<0.000000e+00> : vector<1xf32>
    %16 = vector.multi_reduction <add>, %15, %cst_8 [1, 2] : vector<1x200x128xf32> to vector<1xf32>
    %17 = vector.shape_cast %16 : vector<1xf32> to vector<1x1x1xf32>
    %18 = vector.extract %17[0, 0, 0] : f32 from vector<1x1x1xf32>
    %19 = vector.shape_cast %2 : vector<200x1xf32> to vector<1x200x1xf32>
    %cst_9 = arith.constant dense<0.000000e+00> : vector<1xf32>
    %20 = vector.multi_reduction <add>, %19, %cst_9 [1, 2] : vector<1x200x1xf32> to vector<1xf32>
    %21 = vector.shape_cast %20 : vector<1xf32> to vector<1x1x1xf32>
    %22 = vector.extract %21[0, 0, 0] : f32 from vector<1x1x1xf32>
    %23 = arith.mulf %2, %2 : vector<200x1xf32>
    %24 = vector.shape_cast %23 : vector<200x1xf32> to vector<1x200x1xf32>
    %cst_10 = arith.constant dense<0.000000e+00> : vector<1xf32>
    %25 = vector.multi_reduction <add>, %24, %cst_10 [1, 2] : vector<1x200x1xf32> to vector<1xf32>
    %26 = vector.shape_cast %25 : vector<1xf32> to vector<1x1x1xf32>
    %27 = vector.extract %26[0, 0, 0] : f32 from vector<1x1x1xf32>
    %cst_11 = arith.constant 2.000000e+02 : f32
    %28 = vector.broadcast %cst_11 : f32 to vector<1x128xf32>
    %29 = arith.divf %8, %28 : vector<1x128xf32>
    %30 = arith.mulf %22, %22 : f32
    %31 = arith.subf %30, %27 : f32
    %32 = arith.divf %22, %31 : f32
    %cst_12 = arith.constant 2.000000e+00 : f32
    %33 = vector.broadcast %cst_12 : f32 to vector<1x128xf32>
    %34 = arith.mulf %33, %29 : vector<1x128xf32>
    %35 = arith.mulf %34, %10 : vector<1x128xf32>
    %36 = arith.subf %13, %35 : vector<1x128xf32>
    %37 = vector.broadcast %22 : f32 to vector<1x128xf32>
    %38 = arith.mulf %37, %29 : vector<1x128xf32>
    %39 = arith.mulf %38, %29 : vector<1x128xf32>
    %40 = arith.addf %36, %39 : vector<1x128xf32>
    %41 = vector.broadcast %32 : f32 to vector<1x128xf32>
    %42 = arith.mulf %41, %40 : vector<1x128xf32>
    %cst_13 = arith.constant 1.000000e-03 : f32
    %43 = vector.broadcast %cst_13 : f32 to vector<1x128xf32>
    %44 = arith.addf %42, %43 : vector<1x128xf32>
    %45 = math.sqrt %44 : vector<1x128xf32>
    %cst_14 = arith.constant 1.000000e+00 : f32
    %46 = vector.broadcast %cst_14 : f32 to vector<1x128xf32>
    %47 = arith.subf %46, %45 : vector<1x128xf32>
    %cst_15 = arith.constant 0.000000e+00 : f32
    %48 = vector.broadcast %cst_15 : f32 to vector<1x128xf32>
    %49 = arith.maximumf %47, %48 : vector<1x128xf32>
    %50 = vector.shape_cast %49 : vector<1x128xf32> to vector<1x1x128xf32>
    %cst_16 = arith.constant dense<0.000000e+00> : vector<1xf32>
    %51 = vector.multi_reduction <add>, %50, %cst_16 [1, 2] : vector<1x1x128xf32> to vector<1xf32>
    %52 = vector.shape_cast %51 : vector<1xf32> to vector<1x1x1xf32>
    %53 = vector.extract %52[0, 0, 0] : f32 from vector<1x1x1xf32>
    %cst_17 = arith.constant 1.280000e+02 : f32
    %54 = arith.divf %53, %cst_17 : f32
    %cst_18 = arith.constant 2.000000e+02 : f32
    %cst_19 = arith.constant 1.000000e+00 : f32
    %55 = arith.subf %cst_18, %cst_19 : f32
    %cst_20 = arith.constant 1.000000e+00 : f32
    %56 = arith.divf %cst_20, %55 : f32
    %57 = arith.mulf %6, %6 : vector<128x128xf32>
    %58 = vector.shape_cast %57 : vector<128x128xf32> to vector<1x128x128xf32>
    %cst_21 = arith.constant dense<0.000000e+00> : vector<1xf32>
    %59 = vector.multi_reduction <add>, %58, %cst_21 [1, 2] : vector<1x128x128xf32> to vector<1xf32>
    %60 = vector.shape_cast %59 : vector<1xf32> to vector<1x1x1xf32>
    %61 = vector.extract %60[0, 0, 0] : f32 from vector<1x1x1xf32>
    %cst_22 = arith.constant dense<0.000000e+00> : vector<1x128xf32>
    %62 = tpu.matmul %29, %6, %cst_22 {dimension_numbers = #tpu.dot_dimension_numbers<[1], [0], [0], [1], [0, 0, 1, 1], [], []>} : vector<1x128xf32>, vector<128x128xf32>, vector<1x128xf32> -> vector<1x128xf32>
    %63 = arith.mulf %62, %29 : vector<1x128xf32>
    %64 = vector.shape_cast %63 : vector<1x128xf32> to vector<1x1x128xf32>
    %cst_23 = arith.constant dense<0.000000e+00> : vector<1xf32>
    %65 = vector.multi_reduction <add>, %64, %cst_23 [1, 2] : vector<1x1x128xf32> to vector<1xf32>
    %66 = vector.shape_cast %65 : vector<1xf32> to vector<1x1x1xf32>
    %67 = vector.extract %66[0, 0, 0] : f32 from vector<1x1x1xf32>
    %68 = arith.mulf %29, %29 : vector<1x128xf32>
    %69 = vector.shape_cast %68 : vector<1x128xf32> to vector<1x1x128xf32>
    %cst_24 = arith.constant dense<0.000000e+00> : vector<1xf32>
    %70 = vector.multi_reduction <add>, %69, %cst_24 [1, 2] : vector<1x1x128xf32> to vector<1xf32>
    %71 = vector.shape_cast %70 : vector<1xf32> to vector<1x1x1xf32>
    %72 = vector.extract %71[0, 0, 0] : f32 from vector<1x1x1xf32>
    %cst_25 = arith.constant 2.000000e+00 : f32
    %cst_26 = arith.constant 2.000000e+02 : f32
    %73 = arith.mulf %cst_25, %cst_26 : f32
    %74 = arith.mulf %73, %67 : f32
    %75 = arith.subf %61, %74 : f32
    %cst_27 = arith.constant 2.000000e+02 : f32
    %cst_28 = arith.constant 2.000000e+02 : f32
    %76 = arith.mulf %cst_27, %cst_28 : f32
    %77 = arith.mulf %76, %72 : f32
    %78 = arith.mulf %77, %72 : f32
    %79 = arith.addf %75, %78 : f32
    %80 = arith.mulf %79, %56 : f32
    %81 = arith.mulf %80, %56 : f32
    %82 = tpu.iota {dimensions = array<i32: 0>} : vector<128x128xi32>
    %83 = tpu.iota {dimensions = array<i32: 1>} : vector<128x128xi32>
    %84 = arith.cmpi eq, %82, %83 : vector<128x128xi32>
    %cst_29 = arith.constant 0.000000e+00 : f32
    %85 = vector.broadcast %cst_29 : f32 to vector<128x128xf32>
    %86 = arith.select %84, %6, %85 : vector<128x128xi1>, vector<128x128xf32>
    %cst_30 = arith.constant dense<0.000000e+00> : vector<128xf32>
    %87 = vector.multi_reduction <add>, %86, %cst_30 [0] : vector<128x128xf32> to vector<128xf32>
    %88 = vector.shape_cast %87 : vector<128xf32> to vector<1x128xf32>
    %cst_31 = arith.constant 2.000000e+02 : f32
    %89 = vector.broadcast %cst_31 : f32 to vector<1x128xf32>
    %90 = arith.mulf %89, %29 : vector<1x128xf32>
    %91 = arith.mulf %90, %29 : vector<1x128xf32>
    %92 = arith.subf %88, %91 : vector<1x128xf32>
    %93 = vector.broadcast %56 : f32 to vector<1x128xf32>
    %94 = arith.mulf %92, %93 : vector<1x128xf32>
    %95 = arith.mulf %94, %94 : vector<1x128xf32>
    %96 = vector.shape_cast %95 : vector<1x128xf32> to vector<1x1x128xf32>
    %cst_32 = arith.constant dense<0.000000e+00> : vector<1xf32>
    %97 = vector.multi_reduction <add>, %96, %cst_32 [1, 2] : vector<1x1x128xf32> to vector<1xf32>
    %98 = vector.shape_cast %97 : vector<1xf32> to vector<1x1x1xf32>
    %99 = vector.extract %98[0, 0, 0] : f32 from vector<1x1x1xf32>
    %100 = arith.subf %81, %99 : f32
    %cst_33 = arith.constant 2.000000e+00 : f32
    %101 = arith.mulf %cst_33, %100 : f32
    %cst_34 = arith.constant 1.280000e+02 : f32
    %102 = arith.divf %101, %cst_34 : f32
    %cst_35 = arith.constant 2.000000e+02 : f32
    %cst_36 = arith.constant 1.280000e+02 : f32
    %103 = arith.mulf %cst_35, %cst_36 : f32
    %104 = arith.divf %18, %103 : f32
    %cst_37 = arith.constant 2.500000e+01 : f32
    %105 = arith.mulf %cst_37, %104 : f32
    %cst_38 = arith.constant 2.500000e+01 : f32
    %106 = arith.mulf %cst_38, %54 : f32
    %107 = arith.addf %105, %106 : f32
    %cst_39 = arith.constant 1.000000e+00 : f32
    %108 = arith.mulf %cst_39, %102 : f32
    %109 = arith.addf %107, %108 : f32
    %c0_40 = arith.constant 0 : index
    %c0_41 = arith.constant 0 : index
    %110 = memref.load %arg4[%c0_40, %c0_41] : memref<1x1xf32, #tpu.memory_space<smem>>
    memref.store %109, %arg4[%c0_40, %c0_41] : memref<1x1xf32, #tpu.memory_space<smem>>
    return
  }
  func.func @transform_0(%arg0: i32) -> (i32, i32) {
    %c0_i32 = arith.constant 0 : i32
    %c0_i32_0 = arith.constant 0 : i32
    return %arg0, %c0_i32 : i32, i32
  }
  func.func @transform_1(%arg0: i32) -> (i32, i32) {
    %c0_i32 = arith.constant 0 : i32
    %c0_i32_0 = arith.constant 0 : i32
    return %arg0, %c0_i32 : i32, i32
  }
  func.func @transform_2(%arg0: i32) -> (i32, i32) {
    %c0_i32 = arith.constant 0 : i32
    %c0_i32_0 = arith.constant 0 : i32
    return %arg0, %c0_i32 : i32, i32
  }
  func.func @transform_3(%arg0: i32) -> (i32, i32) {
    %c0_i32 = arith.constant 0 : i32
    %c0_i32_0 = arith.constant 0 : i32
    %c0_i32_1 = arith.constant 0 : i32
    return %c0_i32, %c0_i32_0 : i32, i32
  }
}

</mosaic_0001>

<llo_original>
// kernel: tpu_custom_call.1
$region0: #{tpu_custom_call.1}
  #allocation0 [shape = 'u32[]', space=smem, size = 0x4, offset = 0x4, fixed_abs, tag = 'smem constant byte address 0x4 - core index']
  #allocation1 [shape = 'u32[144,128]{1,0:T(1,128)}', space=vmem, size = 0x12000, scoped, tag = 'internal scratch']
  %s0 = inlined_call_operand.vmem [shape: f32[200,128], index: 0, kind: input, shape index: {}]
  %s1 = inlined_call_operand.hbm [shape: f32[200,128], index: 1, kind: input, shape index: {}]
  %s2 = inlined_call_operand.vmem [shape: f32[200,1], index: 2, kind: input, shape index: {}]
  %s3 = inlined_call_operand.hbm [shape: f32[1,1], index: 3, kind: output, shape index: {}]
  %s4 = sld [smem:[#allocation0]]
  $region26: #{tpu_custom_call.1} parent=0
    _
  %s6 = ssub.s32 1, %s4
  %s7 = scalar_select 0, %s6, %s4
  $region1: #{tpu_custom_call.1} parent=0
    #allocation2 [shape = 'u8[102400]{0}', space=vmem, size = 0x19000, scoped, tag = 'input window, operand 1, single buffered']
    #allocation3 [shape = 's32[1]{0}', space=sflag, size = 0x4, scoped, tag = 'scoped memory for tpu_custom_call.1']
    #allocation4 [shape = 's32[1]{0}', space=sflag, size = 0x4, scoped, tag = 'scoped memory for tpu_custom_call.1']
    #allocation5 [shape = 'u8[512]{0}', space=smem, size = 0x200, scoped, tag = 'output window, operand 0, single buffered']
    %8 = vsyncpa [#allocation3], 0
    %9 = vsyncpa [#allocation4], 0
    // Predicated region
    $region2: #{tpu_custom_call.1} parent=1 // pred_check
      _
    $region3: #{tpu_custom_call.1} parent=1 // pred_check_branch
      %11 = sbr.rel (0) target = $region5
    $region4: #{tpu_custom_call.1} parent=1 // pred_region
      _
    $region5: #{tpu_custom_call.1} parent=1 // pred_fallthru
      _
    // Predicated region
    $region6: #{tpu_custom_call.1} parent=1 // pred_check
      _
    $region7: #{tpu_custom_call.1} parent=1 // pred_check_branch
      %13 = sbr.rel (0) target = $region9
    $region8: #{tpu_custom_call.1} parent=1 // pred_region
      %s15 = ssub.s32 3200, 3200
      %16 = vsyncadd [#allocation3], %s15
      %s17 = sshll.u32 [#allocation2], 4
      %s18 = int_to_ptr.vmem [resolvable:$true] %s17
      %23 = dma.hbm_to_vmem [thread:$0]  %s1, 3200, %s18, [#allocation3], 128, 128, 8
    $region9: #{tpu_custom_call.1} parent=1 // pred_fallthru
      _
    // Predicated region
    $region10: #{tpu_custom_call.1} parent=1 // pred_check
      _
    $region11: #{tpu_custom_call.1} parent=1 // pred_check_branch
      %25 = sbr.rel (0) target = $region13
    $region12: #{tpu_custom_call.1} parent=1 // pred_region
      _
    $region13: #{tpu_custom_call.1} parent=1 // pred_fallthru
      _
    // Predicated region
    $region14: #{tpu_custom_call.1} parent=1 // pred_check
      _
    $region15: #{tpu_custom_call.1} parent=1 // pred_check_branch
      %27 = sbr.rel (0) target = $region17
    $region16: #{tpu_custom_call.1} parent=1 // pred_region
      %28 = dma.done [#allocation3], 3200
    $region17: #{tpu_custom_call.1} parent=1 // pred_fallthru
      _
    %v29 = vld [vmem:[%s0] sm:$0xff]
    %v30 = vld [vmem:[%s0 + $0x8] sm:$0xff]
    %v31 = vld [vmem:[%s0 + $0x10] sm:$0xff]
    %v32 = vld [vmem:[%s0 + $0x18] sm:$0xff]
    %v33 = vld [vmem:[%s0 + $0x20] sm:$0xff]
    %v34 = vld [vmem:[%s0 + $0x28] sm:$0xff]
    %v35 = vld [vmem:[%s0 + $0x30] sm:$0xff]
    %v36 = vld [vmem:[%s0 + $0x38] sm:$0xff]
    %v37 = vld [vmem:[%s0 + $0x40] sm:$0xff]
    %v38 = vld [vmem:[%s0 + $0x48] sm:$0xff]
    %v39 = vld [vmem:[%s0 + $0x50] sm:$0xff]
    %v40 = vld [vmem:[%s0 + $0x58] sm:$0xff]
    %v41 = vld [vmem:[%s0 + $0x60] sm:$0xff]
    %v42 = vld [vmem:[%s0 + $0x68] sm:$0xff]
    %v43 = vld [vmem:[%s0 + $0x70] sm:$0xff]
    %v44 = vld [vmem:[%s0 + $0x78] sm:$0xff]
    %v45 = vld [vmem:[%s0 + $0x80] sm:$0xff]
    %v46 = vld [vmem:[%s0 + $0x88] sm:$0xff]
    %v47 = vld [vmem:[%s0 + $0x90] sm:$0xff]
    %v48 = vld [vmem:[%s0 + $0x98] sm:$0xff]
    %v49 = vld [vmem:[%s0 + $0xa0] sm:$0xff]
    %v50 = vld [vmem:[%s0 + $0xa8] sm:$0xff]
    %v51 = vld [vmem:[%s0 + $0xb0] sm:$0xff]
    %v52 = vld [vmem:[%s0 + $0xb8] sm:$0xff]
    %v53 = vld [vmem:[%s0 + $0xc0] sm:$0xff]
    %v54 = vld [vmem:[#allocation2] sm:$0xff]
    %v55 = vld [vmem:[#allocation2 + $0x8] sm:$0xff]
    %v56 = vld [vmem:[#allocation2 + $0x10] sm:$0xff]
    %v57 = vld [vmem:[#allocation2 + $0x18] sm:$0xff]
    %v58 = vld [vmem:[#allocation2 + $0x20] sm:$0xff]
    %v59 = vld [vmem:[#allocation2 + $0x28] sm:$0xff]
    %v60 = vld [vmem:[#allocation2 + $0x30] sm:$0xff]
    %v61 = vld [vmem:[#allocation2 + $0x38] sm:$0xff]
    %v62 = vld [vmem:[#allocation2 + $0x40] sm:$0xff]
    %v63 = vld [vmem:[#allocation2 + $0x48] sm:$0xff]
    %v64 = vld [vmem:[#allocation2 + $0x50] sm:$0xff]
    %v65 = vld [vmem:[#allocation2 + $0x58] sm:$0xff]
    %v66 = vld [vmem:[#allocation2 + $0x60] sm:$0xff]
    %v67 = vld [vmem:[#allocation2 + $0x68] sm:$0xff]
    %v68 = vld [vmem:[#allocation2 + $0x70] sm:$0xff]
    %v69 = vld [vmem:[#allocation2 + $0x78] sm:$0xff]
    %v70 = vld [vmem:[#allocation2 + $0x80] sm:$0xff]
    %v71 = vld [vmem:[#allocation2 + $0x88] sm:$0xff]
    %v72 = vld [vmem:[#allocation2 + $0x90] sm:$0xff]
    %v73 = vld [vmem:[#allocation2 + $0x98] sm:$0xff]
    %v74 = vld [vmem:[#allocation2 + $0xa0] sm:$0xff]
    %v75 = vld [vmem:[#allocation2 + $0xa8] sm:$0xff]
    %v76 = vld [vmem:[#allocation2 + $0xb0] sm:$0xff]
    %v77 = vld [vmem:[#allocation2 + $0xb8] sm:$0xff]
    %v78 = vld [vmem:[#allocation2 + $0xc0] sm:$0xff]
    %v79 = vld [vmem:[%s2] sm:$0xff]
    %v80 = vld [vmem:[%s2 + $0x8] sm:$0xff]
    %v81 = vld [vmem:[%s2 + $0x10] sm:$0xff]
    %v82 = vld [vmem:[%s2 + $0x18] sm:$0xff]
    %v83 = vld [vmem:[%s2 + $0x20] sm:$0xff]
    %v84 = vld [vmem:[%s2 + $0x28] sm:$0xff]
    %v85 = vld [vmem:[%s2 + $0x30] sm:$0xff]
    %v86 = vld [vmem:[%s2 + $0x38] sm:$0xff]
    %v87 = vld [vmem:[%s2 + $0x40] sm:$0xff]
    %v88 = vld [vmem:[%s2 + $0x48] sm:$0xff]
    %v89 = vld [vmem:[%s2 + $0x50] sm:$0xff]
    %v90 = vld [vmem:[%s2 + $0x58] sm:$0xff]
    %v91 = vld [vmem:[%s2 + $0x60] sm:$0xff]
    %v92 = vld [vmem:[%s2 + $0x68] sm:$0xff]
    %v93 = vld [vmem:[%s2 + $0x70] sm:$0xff]
    %v94 = vld [vmem:[%s2 + $0x78] sm:$0xff]
    %v95 = vld [vmem:[%s2 + $0x80] sm:$0xff]
    %v96 = vld [vmem:[%s2 + $0x88] sm:$0xff]
    %v97 = vld [vmem:[%s2 + $0x90] sm:$0xff]
    %v98 = vld [vmem:[%s2 + $0x98] sm:$0xff]
    %v99 = vld [vmem:[%s2 + $0xa0] sm:$0xff]
    %v100 = vld [vmem:[%s2 + $0xa8] sm:$0xff]
    %v101 = vld [vmem:[%s2 + $0xb0] sm:$0xff]
    %v102 = vld [vmem:[%s2 + $0xb8] sm:$0xff]
    %v103 = vld [vmem:[%s2 + $0xc0] sm:$0xff]
    %105 = vset.pattern.permute.xlu0 0
    %106 = vperm.xlu0 %105, %v79
    %v107 = vpop.permute.xlu0 %106
    %110 = vset.pattern.permute.xlu0 0
    %111 = vperm.xlu0 %110, %v80
    %v112 = vpop.permute.xlu0 %111
    %115 = vset.pattern.permute.xlu0 0
    %116 = vperm.xlu0 %115, %v81
    %v117 = vpop.permute.xlu0 %116
    %120 = vset.pattern.permute.xlu0 0
    %121 = vperm.xlu0 %120, %v82
    %v122 = vpop.permute.xlu0 %121
    %125 = vset.pattern.permute.xlu0 0
    %126 = vperm.xlu0 %125, %v83
    %v127 = vpop.permute.xlu0 %126
    %130 = vset.pattern.permute.xlu0 0
    %131 = vperm.xlu0 %130, %v84
    %v132 = vpop.permute.xlu0 %131
    %135 = vset.pattern.permute.xlu0 0
    %136 = vperm.xlu0 %135, %v85
    %v137 = vpop.permute.xlu0 %136
    %140 = vset.pattern.permute.xlu0 0
    %141 = vperm.xlu0 %140, %v86
    %v142 = vpop.permute.xlu0 %141
    %145 = vset.pattern.permute.xlu0 0
    %146 = vperm.xlu0 %145, %v87
    %v147 = vpop.permute.xlu0 %146
    %150 = vset.pattern.permute.xlu0 0
    %151 = vperm.xlu0 %150, %v88
    %v152 = vpop.permute.xlu0 %151
    %155 = vset.pattern.permute.xlu0 0
    %156 = vperm.xlu0 %155, %v89
    %v157 = vpop.permute.xlu0 %156
    %160 = vset.pattern.permute.xlu0 0
    %161 = vperm.xlu0 %160, %v90
    %v162 = vpop.permute.xlu0 %161
    %165 = vset.pattern.permute.xlu0 0
    %166 = vperm.xlu0 %165, %v91
    %v167 = vpop.permute.xlu0 %166
    %170 = vset.pattern.permute.xlu0 0
    %171 = vperm.xlu0 %170, %v92
    %v172 = vpop.permute.xlu0 %171
    %175 = vset.pattern.permute.xlu0 0
    %176 = vperm.xlu0 %175, %v93
    %v177 = vpop.permute.xlu0 %176
    %180 = vset.pattern.permute.xlu0 0
    %181 = vperm.xlu0 %180, %v94
    %v182 = vpop.permute.xlu0 %181
    %185 = vset.pattern.permute.xlu0 0
    %186 = vperm.xlu0 %185, %v95
    %v187 = vpop.permute.xlu0 %186
    %190 = vset.pattern.permute.xlu0 0
    %191 = vperm.xlu0 %190, %v96
    %v192 = vpop.permute.xlu0 %191
    %195 = vset.pattern.permute.xlu0 0
    %196 = vperm.xlu0 %195, %v97
    %v197 = vpop.permute.xlu0 %196
    %200 = vset.pattern.permute.xlu0 0
    %201 = vperm.xlu0 %200, %v98
    %v202 = vpop.permute.xlu0 %201
    %205 = vset.pattern.permute.xlu0 0
    %206 = vperm.xlu0 %205, %v99
    %v207 = vpop.permute.xlu0 %206
    %210 = vset.pattern.permute.xlu0 0
    %211 = vperm.xlu0 %210, %v100
    %v212 = vpop.permute.xlu0 %211
    %215 = vset.pattern.permute.xlu0 0
    %216 = vperm.xlu0 %215, %v101
    %v217 = vpop.permute.xlu0 %216
    %220 = vset.pattern.permute.xlu0 0
    %221 = vperm.xlu0 %220, %v102
    %v222 = vpop.permute.xlu0 %221
    %225 = vset.pattern.permute.xlu0 0
    %226 = vperm.xlu0 %225, %v103
    %v227 = vpop.permute.xlu0 %226
    %v229 = vmul.f32 %v107, %v29
    %v230 = vmul.f32 %v112, %v30
    %v231 = vmul.f32 %v117, %v31
    %v232 = vmul.f32 %v122, %v32
    %v233 = vmul.f32 %v127, %v33
    %v234 = vmul.f32 %v132, %v34
    %v235 = vmul.f32 %v137, %v35
    %v236 = vmul.f32 %v142, %v36
    %v237 = vmul.f32 %v147, %v37
    %v238 = vmul.f32 %v152, %v38
    %v239 = vmul.f32 %v157, %v39
    %v240 = vmul.f32 %v162, %v40
    %v241 = vmul.f32 %v167, %v41
    %v242 = vmul.f32 %v172, %v42
    %v243 = vmul.f32 %v177, %v43
    %v244 = vmul.f32 %v182, %v44
    %v245 = vmul.f32 %v187, %v45
    %v246 = vmul.f32 %v192, %v46
    %v247 = vmul.f32 %v197, %v47
    %v248 = vmul.f32 %v202, %v48
    %v249 = vmul.f32 %v207, %v49
    %v250 = vmul.f32 %v212, %v50
    %v251 = vmul.f32 %v217, %v51
    %v252 = vmul.f32 %v222, %v52
    %v253 = vmul.f32 %v227, %v53
    %v254 = vsub.f32 %v29, %v54
    %v255 = vsub.f32 %v30, %v55
    %v256 = vsub.f32 %v31, %v56
    %v257 = vsub.f32 %v32, %v57
    %v258 = vsub.f32 %v33, %v58
    %v259 = vsub.f32 %v34, %v59
    %v260 = vsub.f32 %v35, %v60
    %v261 = vsub.f32 %v36, %v61
    %v262 = vsub.f32 %v37, %v62
    %v263 = vsub.f32 %v38, %v63
    %v264 = vsub.f32 %v39, %v64
    %v265 = vsub.f32 %v40, %v65
    %v266 = vsub.f32 %v41, %v66
    %v267 = vsub.f32 %v42, %v67
    %v268 = vsub.f32 %v43, %v68
    %v269 = vsub.f32 %v44, %v69
    %v270 = vsub.f32 %v45, %v70
    %v271 = vsub.f32 %v46, %v71
    %v272 = vsub.f32 %v47, %v72
    %v273 = vsub.f32 %v48, %v73
    %v274 = vsub.f32 %v49, %v74
    %v275 = vsub.f32 %v50, %v75
    %v276 = vsub.f32 %v51, %v76
    %v277 = vsub.f32 %v52, %v77
    %v278 = vsub.f32 %v53, %v78
    %279 = vxpose.xlu0.b32.start [1/16] %v29, 128
    %280 = vxpose.xlu0.b32.cont [2/16] %v30, 128
    %281 = vxpose.xlu0.b32.cont [3/16] %v31, 128
    %282 = vxpose.xlu0.b32.cont [4/16] %v32, 128
    %283 = vxpose.xlu0.b32.cont [5/16] %v33, 128
    %284 = vxpose.xlu0.b32.cont [6/16] %v34, 128
    %285 = vxpose.xlu0.b32.cont [7/16] %v35, 128
    %286 = vxpose.xlu0.b32.cont [8/16] %v36, 128
    %287 = vxpose.xlu0.b32.cont [9/16] %v37, 128
    %288 = vxpose.xlu0.b32.cont [10/16] %v38, 128
    %289 = vxpose.xlu0.b32.cont [11/16] %v39, 128
    %290 = vxpose.xlu0.b32.cont [12/16] %v40, 128
    %291 = vxpose.xlu0.b32.cont [13/16] %v41, 128
    %292 = vxpose.xlu0.b32.cont [14/16] %v42, 128
    %293 = vxpose.xlu0.b32.cont [15/16] %v43, 128
    %294 = vxpose.xlu0.b32.end [16/16] %v44, 128
    %v295 = vpop.trf.xlu0
    %v296 = vpop.trf.xlu0
    %v297 = vpop.trf.xlu0
    %v298 = vpop.trf.xlu0
    %v299 = vpop.trf.xlu0
    %v300 = vpop.trf.xlu0
    %v301 = vpop.trf.xlu0
    %v302 = vpop.trf.xlu0
    %v303 = vpop.trf.xlu0
    %v304 = vpop.trf.xlu0
    %v305 = vpop.trf.xlu0
    %v306 = vpop.trf.xlu0
    %v307 = vpop.trf.xlu0
    %v308 = vpop.trf.xlu0
    %v309 = vpop.trf.xlu0
    %v310 = vpop.trf.xlu0
    %311 = vxpose.xlu0.b32.start [1/16] %v45, 128
    %312 = vxpose.xlu0.b32.cont [2/16] %v46, 128
    %313 = vxpose.xlu0.b32.cont [3/16] %v47, 128
    %314 = vxpose.xlu0.b32.cont [4/16] %v48, 128
    %315 = vxpose.xlu0.b32.cont [5/16] %v49, 128
    %316 = vxpose.xlu0.b32.cont [6/16] %v50, 128
    %317 = vxpose.xlu0.b32.cont [7/16] %v51, 128
    %318 = vxpose.xlu0.b32.cont [8/16] %v52, 128
    %319 = vxpose.xlu0.b32.cont [9/16] %v53, 128
    %320 = vxpose.xlu0.b32.cont [10/16] 0.0, 128
    %321 = vxpose.xlu0.b32.cont [11/16] 0.0, 128
    %322 = vxpose.xlu0.b32.cont [12/16] 0.0, 128
    %323 = vxpose.xlu0.b32.cont [13/16] 0.0, 128
    %324 = vxpose.xlu0.b32.cont [14/16] 0.0, 128
    %325 = vxpose.xlu0.b32.cont [15/16] 0.0, 128
    %326 = vxpose.xlu0.b32.end [16/16] 0.0, 128
    %v327 = vpop.trf.xlu0
    %v328 = vpop.trf.xlu0
    %v329 = vpop.trf.xlu0
    %v330 = vpop.trf.xlu0
    %v331 = vpop.trf.xlu0
    %v332 = vpop.trf.xlu0
    %v333 = vpop.trf.xlu0
    %v334 = vpop.trf.xlu0
    %v335 = vpop.trf.xlu0
    %v336 = vpop.trf.xlu0
    %v337 = vpop.trf.xlu0
    %v338 = vpop.trf.xlu0
    %v339 = vpop.trf.xlu0
    %v340 = vpop.trf.xlu0
    %v341 = vpop.trf.xlu0
    %v342 = vpop.trf.xlu0
    %vm343 = vcmask 588800
    %v345 = vsel %vm343, %v327, 0
    %v348 = vsel %vm343, %v328, 0
    %v351 = vsel %vm343, %v329, 0
    %v354 = vsel %vm343, %v330, 0
    %v357 = vsel %vm343, %v331, 0
    %v360 = vsel %vm343, %v332, 0
    %v363 = vsel %vm343, %v333, 0
    %v366 = vsel %vm343, %v334, 0
    %v369 = vsel %vm343, %v335, 0
    %v372 = vsel %vm343, %v336, 0
    %v375 = vsel %vm343, %v337, 0
    %v378 = vsel %vm343, %v338, 0
    %v381 = vsel %vm343, %v339, 0
    %v384 = vsel %vm343, %v340, 0
    %v387 = vsel %vm343, %v341, 0
    %v390 = vsel %vm343, %v342, 0
    %392 = vmatprep.subr.mxu0 0.0
    %393 = vmatpush1.msra.mxu0 %v29
    %394 = vmatprep.subr.mxu0 0.0
    %395 = vmatpush1.msra.mxu0 %v30
    %396 = vmatprep.subr.mxu0 0.0
    %397 = vmatpush1.msra.mxu0 %v31
    %398 = vmatprep.subr.mxu0 0.0
    %399 = vmatpush1.msra.mxu0 %v32
    %400 = vmatprep.subr.mxu0 0.0
    %401 = vmatpush1.msra.mxu0 %v33
    %402 = vmatprep.subr.mxu0 0.0
    %403 = vmatpush1.msra.mxu0 %v34
    %404 = vmatprep.subr.mxu0 0.0
    %405 = vmatpush1.msra.mxu0 %v35
    %406 = vmatprep.subr.mxu0 0.0
    %407 = vmatpush1.msra.mxu0 %v36
    %408 = vmatprep.subr.mxu0 0.0
    %409 = vmatpush1.msra.mxu0 %v37
    %410 = vmatprep.subr.mxu0 0.0
    %411 = vmatpush1.msra.mxu0 %v38
    %412 = vmatprep.subr.mxu0 0.0
    %413 = vmatpush1.msra.mxu0 %v39
    %414 = vmatprep.subr.mxu0 0.0
    %415 = vmatpush1.msra.mxu0 %v40
    %416 = vmatprep.subr.mxu0 0.0
    %417 = vmatpush1.msra.mxu0 %v41
    %418 = vmatprep.subr.mxu0 0.0
    %419 = vmatpush1.msra.mxu0 %v42
    %420 = vmatprep.subr.mxu0 0.0
    %421 = vmatpush1.msra.mxu0 %v43
    %422 = vmatprep.subr.mxu0 0.0
    %423 = vmatpush1.msra.mxu0 %v44
    %424 = vmatprep.subr.mxu0 0.0
    %425 = vmatpush1.msra.mxu0 %v45
    %426 = vmatprep.subr.mxu0 0.0
    %427 = vmatpush1.msra.mxu0 %v46
    %428 = vmatprep.subr.mxu0 0.0
    %429 = vmatpush1.msra.mxu0 %v47
    %430 = vmatprep.subr.mxu0 0.0
    %431 = vmatpush1.msra.mxu0 %v48
    %432 = vmatprep.subr.mxu0 0.0
    %433 = vmatpush1.msra.mxu0 %v49
    %434 = vmatprep.subr.mxu0 0.0
    %435 = vmatpush1.msra.mxu0 %v50
    %436 = vmatprep.subr.mxu0 0.0
    %437 = vmatpush1.msra.mxu0 %v51
    %438 = vmatprep.subr.mxu0 0.0
    %439 = vmatpush1.msra.mxu0 %v52
    %440 = vmatprep.subr.mxu0 0.0
    %441 = vmatpush1.msra.mxu0 %v53
    %442 = vmatprep.subr.mxu0 0.0
    %443 = vmatpush1.msra.mxu0 0.0
    %444 = vmatprep.subr.mxu0 0.0
    %445 = vmatpush1.msra.mxu0 0.0
    %446 = vmatprep.subr.mxu0 0.0
    %447 = vmatpush1.msra.mxu0 0.0
    %448 = vmatprep.subr.mxu0 0.0
    %449 = vmatpush1.msra.mxu0 0.0
    %450 = vmatprep.subr.mxu0 0.0
    %451 = vmatpush1.msra.mxu0 0.0
    %452 = vmatprep.subr.mxu0 0.0
    %453 = vmatpush1.msra.mxu0 0.0
    %454 = vmatprep.subr.mxu0 0.0
    %455 = vmatpush1.msra.mxu0 0.0
    %456 = vmatprep.mubr.f32.mxu0 %v345
    %457 = vmatmul.mubr.f32.gmra.mrb[0].mxu0 %v295
    %v458 = vpop.f32.mrb[0].mxu0
    %v459 = vadd.f32 0.0, %v458
    %v460 = vpop.f32.mrb[0].mxu0
    %461 = vmatprep.mubr.f32.mxu0 %v348
    %462 = vmatmul.mubr.f32.gmra.mrb[0].mxu0 %v296
    %v463 = vpop.f32.mrb[0].mxu0
    %v464 = vadd.f32 0.0, %v463
    %v465 = vpop.f32.mrb[0].mxu0
    %466 = vmatprep.mubr.f32.mxu0 %v351
    %467 = vmatmul.mubr.f32.gmra.mrb[0].mxu0 %v297
    %v468 = vpop.f32.mrb[0].mxu0
    %v469 = vadd.f32 0.0, %v468
    %v470 = vpop.f32.mrb[0].mxu0
    %471 = vmatprep.mubr.f32.mxu0 %v354
    %472 = vmatmul.mubr.f32.gmra.mrb[0].mxu0 %v298
    %v473 = vpop.f32.mrb[0].mxu0
    %v474 = vadd.f32 0.0, %v473
    %v475 = vpop.f32.mrb[0].mxu0
    %476 = vmatprep.mubr.f32.mxu0 %v357
    %477 = vmatmul.mubr.f32.gmra.mrb[0].mxu0 %v299
    %v478 = vpop.f32.mrb[0].mxu0
    %v479 = vadd.f32 0.0, %v478
    %v480 = vpop.f32.mrb[0].mxu0
    %481 = vmatprep.mubr.f32.mxu0 %v360
    %482 = vmatmul.mubr.f32.gmra.mrb[0].mxu0 %v300
    %v483 = vpop.f32.mrb[0].mxu0
    %v484 = vadd.f32 0.0, %v483
    %v485 = vpop.f32.mrb[0].mxu0
    %486 = vmatprep.mubr.f32.mxu0 %v363
    %487 = vmatmul.mubr.f32.gmra.mrb[0].mxu0 %v301
    %v488 = vpop.f32.mrb[0].mxu0
    %v489 = vadd.f32 0.0, %v488
    %v490 = vpop.f32.mrb[0].mxu0
    %491 = vmatprep.mubr.f32.mxu0 %v366
    %492 = vmatmul.mubr.f32.gmra.mrb[0].mxu0 %v302
    %v493 = vpop.f32.mrb[0].mxu0
    %v494 = vadd.f32 0.0, %v493
    %v495 = vpop.f32.mrb[0].mxu0
    %496 = vmatprep.mubr.f32.mxu0 %v369
    %497 = vmatmul.mubr.f32.gmra.mrb[0].mxu0 %v303
    %v498 = vpop.f32.mrb[0].mxu0
    %v499 = vadd.f32 0.0, %v498
    %v500 = vpop.f32.mrb[0].mxu0
    %501 = vmatprep.mubr.f32.mxu0 %v372
    %502 = vmatmul.mubr.f32.gmra.mrb[0].mxu0 %v304
    %v503 = vpop.f32.mrb[0].mxu0
    %v504 = vadd.f32 0.0, %v503
    %v505 = vpop.f32.mrb[0].mxu0
    %506 = vmatprep.mubr.f32.mxu0 %v375
    %507 = vmatmul.mubr.f32.gmra.mrb[0].mxu0 %v305
    %v508 = vpop.f32.mrb[0].mxu0
    %v509 = vadd.f32 0.0, %v508
    %v510 = vpop.f32.mrb[0].mxu0
    %511 = vmatprep.mubr.f32.mxu0 %v378
    %512 = vmatmul.mubr.f32.gmra.mrb[0].mxu0 %v306
    %v513 = vpop.f32.mrb[0].mxu0
    %v514 = vadd.f32 0.0, %v513
    %v515 = vpop.f32.mrb[0].mxu0
    %516 = vmatprep.mubr.f32.mxu0 %v381
    %517 = vmatmul.mubr.f32.gmra.mrb[0].mxu0 %v307
    %v518 = vpop.f32.mrb[0].mxu0
    %v519 = vadd.f32 0.0, %v518
    %v520 = vpop.f32.mrb[0].mxu0
    %521 = vmatprep.mubr.f32.mxu0 %v384
    %522 = vmatmul.mubr.f32.gmra.mrb[0].mxu0 %v308
    %v523 = vpop.f32.mrb[0].mxu0
    %v524 = vadd.f32 0.0, %v523
    %v525 = vpop.f32.mrb[0].mxu0
    %526 = vmatprep.mubr.f32.mxu0 %v387
    %527 = vmatmul.mubr.f32.gmra.mrb[0].mxu0 %v309
    %v528 = vpop.f32.mrb[0].mxu0
    %v529 = vadd.f32 0.0, %v528
    %v530 = vpop.f32.mrb[0].mxu0
    %531 = vmatprep.mubr.f32.mxu0 %v390
    %532 = vmatmul.mubr.f32.gmra.mrb[0].mxu0 %v310
    %v533 = vpop.f32.mrb[0].mxu0
    %v534 = vadd.f32 0.0, %v533
    %v535 = vpop.f32.mrb[0].mxu0
    %536 = vdwg.mxu0
    %v537 = vadd.f32 %v29, %v30
    %v538 = vadd.f32 %v537, %v31
    %v539 = vadd.f32 %v538, %v32
    %v540 = vadd.f32 %v539, %v33
    %v541 = vadd.f32 %v540, %v34
    %v542 = vadd.f32 %v541, %v35
    %v543 = vadd.f32 %v542, %v36
    %v544 = vadd.f32 %v543, %v37
    %v545 = vadd.f32 %v544, %v38
    %v546 = vadd.f32 %v545, %v39
    %v547 = vadd.f32 %v546, %v40
    %v548 = vadd.f32 %v547, %v41
    %v549 = vadd.f32 %v548, %v42
    %v550 = vadd.f32 %v549, %v43
    %v551 = vadd.f32 %v550, %v44
    %v552 = vadd.f32 %v551, %v45
    %v553 = vadd.f32 %v552, %v46
    %v554 = vadd.f32 %v553, %v47
    %v555 = vadd.f32 %v554, %v48
    %v556 = vadd.f32 %v555, %v49
    %v557 = vadd.f32 %v556, %v50
    %v558 = vadd.f32 %v557, %v51
    %v559 = vadd.f32 %v558, %v52
    %v560 = vadd.f32 %v559, %v53
    %v561 = vrot.slane %v560, 4
    %v562 = vadd.f32 %v560, %v561
    %v563 = vrot.slane %v562, 2
    %v564 = vadd.f32 %v562, %v563
    %v565 = vrot.slane %v564, 1
    %v566 = vadd.f32 %v564, %v565
    %v567 = vadd.f32 %v229, %v230
    %v568 = vadd.f32 %v567, %v231
    %v569 = vadd.f32 %v568, %v232
    %v570 = vadd.f32 %v569, %v233
    %v571 = vadd.f32 %v570, %v234
    %v572 = vadd.f32 %v571, %v235
    %v573 = vadd.f32 %v572, %v236
    %v574 = vadd.f32 %v573, %v237
    %v575 = vadd.f32 %v574, %v238
    %v576 = vadd.f32 %v575, %v239
    %v577 = vadd.f32 %v576, %v240
    %v578 = vadd.f32 %v577, %v241
    %v579 = vadd.f32 %v578, %v242
    %v580 = vadd.f32 %v579, %v243
    %v581 = vadd.f32 %v580, %v244
    %v582 = vadd.f32 %v581, %v245
    %v583 = vadd.f32 %v582, %v246
    %v584 = vadd.f32 %v583, %v247
    %v585 = vadd.f32 %v584, %v248
    %v586 = vadd.f32 %v585, %v249
    %v587 = vadd.f32 %v586, %v250
    %v588 = vadd.f32 %v587, %v251
    %v589 = vadd.f32 %v588, %v252
    %v590 = vadd.f32 %v589, %v253
    %v591 = vrot.slane %v590, 4
    %v592 = vadd.f32 %v590, %v591
    %v593 = vrot.slane %v592, 2
    %v594 = vadd.f32 %v592, %v593
    %v595 = vrot.slane %v594, 1
    %v596 = vadd.f32 %v594, %v595
    %v597 = vmul.f32 %v229, %v29
    %v598 = vmul.f32 %v230, %v30
    %v599 = vmul.f32 %v231, %v31
    %v600 = vmul.f32 %v232, %v32
    %v601 = vmul.f32 %v233, %v33
    %v602 = vmul.f32 %v234, %v34
    %v603 = vmul.f32 %v235, %v35
    %v604 = vmul.f32 %v236, %v36
    %v605 = vmul.f32 %v237, %v37
    %v606 = vmul.f32 %v238, %v38
    %v607 = vmul.f32 %v239, %v39
    %v608 = vmul.f32 %v240, %v40
    %v609 = vmul.f32 %v241, %v41
    %v610 = vmul.f32 %v242, %v42
    %v611 = vmul.f32 %v243, %v43
    %v612 = vmul.f32 %v244, %v44
    %v613 = vmul.f32 %v245, %v45
    %v614 = vmul.f32 %v246, %v46
    %v615 = vmul.f32 %v247, %v47
    %v616 = vmul.f32 %v248, %v48
    %v617 = vmul.f32 %v249, %v49
    %v618 = vmul.f32 %v250, %v50
    %v619 = vmul.f32 %v251, %v51
    %v620 = vmul.f32 %v252, %v52
    %v621 = vmul.f32 %v253, %v53
    %v622 = vadd.f32 %v597, %v598
    %v623 = vadd.f32 %v622, %v599
    %v624 = vadd.f32 %v623, %v600
    %v625 = vadd.f32 %v624, %v601
    %v626 = vadd.f32 %v625, %v602
    %v627 = vadd.f32 %v626, %v603
    %v628 = vadd.f32 %v627, %v604
    %v629 = vadd.f32 %v628, %v605
    %v630 = vadd.f32 %v629, %v606
    %v631 = vadd.f32 %v630, %v607
    %v632 = vadd.f32 %v631, %v608
    %v633 = vadd.f32 %v632, %v609
    %v634 = vadd.f32 %v633, %v610
    %v635 = vadd.f32 %v634, %v611
    %v636 = vadd.f32 %v635, %v612
    %v637 = vadd.f32 %v636, %v613
    %v638 = vadd.f32 %v637, %v614
    %v639 = vadd.f32 %v638, %v615
    %v640 = vadd.f32 %v639, %v616
    %v641 = vadd.f32 %v640, %v617
    %v642 = vadd.f32 %v641, %v618
    %v643 = vadd.f32 %v642, %v619
    %v644 = vadd.f32 %v643, %v620
    %v645 = vadd.f32 %v644, %v621
    %v646 = vrot.slane %v645, 4
    %v647 = vadd.f32 %v645, %v646
    %v648 = vrot.slane %v647, 2
    %v649 = vadd.f32 %v647, %v648
    %v650 = vrot.slane %v649, 1
    %v651 = vadd.f32 %v649, %v650
    %v652 = vmul.f32 %v254, %v254
    %v653 = vmul.f32 %v255, %v255
    %v654 = vmul.f32 %v256, %v256
    %v655 = vmul.f32 %v257, %v257
    %v656 = vmul.f32 %v258, %v258
    %v657 = vmul.f32 %v259, %v259
    %v658 = vmul.f32 %v260, %v260
    %v659 = vmul.f32 %v261, %v261
    %v660 = vmul.f32 %v262, %v262
    %v661 = vmul.f32 %v263, %v263
    %v662 = vmul.f32 %v264, %v264
    %v663 = vmul.f32 %v265, %v265
    %v664 = vmul.f32 %v266, %v266
    %v665 = vmul.f32 %v267, %v267
    %v666 = vmul.f32 %v268, %v268
    %v667 = vmul.f32 %v269, %v269
    %v668 = vmul.f32 %v270, %v270
    %v669 = vmul.f32 %v271, %v271
    %v670 = vmul.f32 %v272, %v272
    %v671 = vmul.f32 %v273, %v273
    %v672 = vmul.f32 %v274, %v274
    %v673 = vmul.f32 %v275, %v275
    %v674 = vmul.f32 %v276, %v276
    %v675 = vmul.f32 %v277, %v277
    %v676 = vmul.f32 %v278, %v278
    %v677 = vadd.f32 %v652, %v653
    %v678 = vadd.f32 %v677, %v654
    %v679 = vadd.f32 %v678, %v655
    %v680 = vadd.f32 %v679, %v656
    %v681 = vadd.f32 %v680, %v657
    %v682 = vadd.f32 %v681, %v658
    %v683 = vadd.f32 %v682, %v659
    %v684 = vadd.f32 %v683, %v660
    %v685 = vadd.f32 %v684, %v661
    %v686 = vadd.f32 %v685, %v662
    %v687 = vadd.f32 %v686, %v663
    %v688 = vadd.f32 %v687, %v664
    %v689 = vadd.f32 %v688, %v665
    %v690 = vadd.f32 %v689, %v666
    %v691 = vadd.f32 %v690, %v667
    %v692 = vadd.f32 %v691, %v668
    %v693 = vadd.f32 %v692, %v669
    %v694 = vadd.f32 %v693, %v670
    %v695 = vadd.f32 %v694, %v671
    %v696 = vadd.f32 %v695, %v672
    %v697 = vadd.f32 %v696, %v673
    %v698 = vadd.f32 %v697, %v674
    %v699 = vadd.f32 %v698, %v675
    %v700 = vadd.f32 %v699, %v676
    %701 = vadd.xlane.f32.xlu0 %v700
    %v702 = vpop.xlane.xlu0 %701
    %v703 = vrot.slane %v702, 4
    %v704 = vadd.f32 %v702, %v703
    %v705 = vrot.slane %v704, 2
    %v706 = vadd.f32 %v704, %v705
    %v707 = vrot.slane %v706, 1
    %v708 = vadd.f32 %v706, %v707
    %s709 = vtos %v708
    %vm710 = vcmask 7168
    %v711 = vsel %vm710, %v79, 0.0
    %v712 = vsel %vm710, %v80, 0.0
    %v713 = vadd.f32 %v711, %v712
    %v714 = vsel %vm710, %v81, 0.0
    %v715 = vadd.f32 %v713, %v714
    %v716 = vsel %vm710, %v82, 0.0
    %v717 = vadd.f32 %v715, %v716
    %v718 = vsel %vm710, %v83, 0.0
    %v719 = vadd.f32 %v717, %v718
    %v720 = vsel %vm710, %v84, 0.0
    %v721 = vadd.f32 %v719, %v720
    %v722 = vsel %vm710, %v85, 0.0
    %v723 = vadd.f32 %v721, %v722
    %v724 = vsel %vm710, %v86, 0.0
    %v725 = vadd.f32 %v723, %v724
    %v726 = vsel %vm710, %v87, 0.0
    %v727 = vadd.f32 %v725, %v726
    %v728 = vsel %vm710, %v88, 0.0
    %v729 = vadd.f32 %v727, %v728
    %v730 = vsel %vm710, %v89, 0.0
    %v731 = vadd.f32 %v729, %v730
    %v732 = vsel %vm710, %v90, 0.0
    %v733 = vadd.f32 %v731, %v732
    %v734 = vsel %vm710, %v91, 0.0
    %v735 = vadd.f32 %v733, %v734
    %v736 = vsel %vm710, %v92, 0.0
    %v737 = vadd.f32 %v735, %v736
    %v738 = vsel %vm710, %v93, 0.0
    %v739 = vadd.f32 %v737, %v738
    %v740 = vsel %vm710, %v94, 0.0
    %v741 = vadd.f32 %v739, %v740
    %v742 = vsel %vm710, %v95, 0.0
    %v743 = vadd.f32 %v741, %v742
    %v744 = vsel %vm710, %v96, 0.0
    %v745 = vadd.f32 %v743, %v744
    %v746 = vsel %vm710, %v97, 0.0
    %v747 = vadd.f32 %v745, %v746
    %v748 = vsel %vm710, %v98, 0.0
    %v749 = vadd.f32 %v747, %v748
    %v750 = vsel %vm710, %v99, 0.0
    %v751 = vadd.f32 %v749, %v750
    %v752 = vsel %vm710, %v100, 0.0
    %v753 = vadd.f32 %v751, %v752
    %v754 = vsel %vm710, %v101, 0.0
    %v755 = vadd.f32 %v753, %v754
    %v756 = vsel %vm710, %v102, 0.0
    %v757 = vadd.f32 %v755, %v756
    %v758 = vsel %vm710, %v103, 0.0
    %v759 = vadd.f32 %v757, %v758
    %760 = vadd.xlane.f32.xlu0 %v759
    %v761 = vpop.xlane.xlu0 %760
    %v762 = vrot.slane %v761, 4
    %v763 = vadd.f32 %v761, %v762
    %v764 = vrot.slane %v763, 2
    %v765 = vadd.f32 %v763, %v764
    %v766 = vrot.slane %v765, 1
    %v767 = vadd.f32 %v765, %v766
    %s768 = vtos %v767
    %v769 = vmul.f32 %v79, %v79
    %v770 = vmul.f32 %v80, %v80
    %v771 = vmul.f32 %v81, %v81
    %v772 = vmul.f32 %v82, %v82
    %v773 = vmul.f32 %v83, %v83
    %v774 = vmul.f32 %v84, %v84
    %v775 = vmul.f32 %v85, %v85
    %v776 = vmul.f32 %v86, %v86
    %v777 = vmul.f32 %v87, %v87
    %v778 = vmul.f32 %v88, %v88
    %v779 = vmul.f32 %v89, %v89
    %v780 = vmul.f32 %v90, %v90
    %v781 = vmul.f32 %v91, %v91
    %v782 = vmul.f32 %v92, %v92
    %v783 = vmul.f32 %v93, %v93
    %v784 = vmul.f32 %v94, %v94
    %v785 = vmul.f32 %v95, %v95
    %v786 = vmul.f32 %v96, %v96
    %v787 = vmul.f32 %v97, %v97
    %v788 = vmul.f32 %v98, %v98
    %v789 = vmul.f32 %v99, %v99
    %v790 = vmul.f32 %v100, %v100
    %v791 = vmul.f32 %v101, %v101
    %v792 = vmul.f32 %v102, %v102
    %v793 = vmul.f32 %v103, %v103
    %v794 = vsel %vm710, %v769, 0.0
    %v795 = vsel %vm710, %v770, 0.0
    %v796 = vadd.f32 %v794, %v795
    %v797 = vsel %vm710, %v771, 0.0
    %v798 = vadd.f32 %v796, %v797
    %v799 = vsel %vm710, %v772, 0.0
    %v800 = vadd.f32 %v798, %v799
    %v801 = vsel %vm710, %v773, 0.0
    %v802 = vadd.f32 %v800, %v801
    %v803 = vsel %vm710, %v774, 0.0
    %v804 = vadd.f32 %v802, %v803
    %v805 = vsel %vm710, %v775, 0.0
    %v806 = vadd.f32 %v804, %v805
    %v807 = vsel %vm710, %v776, 0.0
    %v808 = vadd.f32 %v806, %v807
    %v809 = vsel %vm710, %v777, 0.0
    %v810 = vadd.f32 %v808, %v809
    %v811 = vsel %vm710, %v778, 0.0
    %v812 = vadd.f32 %v810, %v811
    %v813 = vsel %vm710, %v779, 0.0
    %v814 = vadd.f32 %v812, %v813
    %v815 = vsel %vm710, %v780, 0.0
    %v816 = vadd.f32 %v814, %v815
    %v817 = vsel %vm710, %v781, 0.0
    %v818 = vadd.f32 %v816, %v817
    %v819 = vsel %vm710, %v782, 0.0
    %v820 = vadd.f32 %v818, %v819
    %v821 = vsel %vm710, %v783, 0.0
    %v822 = vadd.f32 %v820, %v821
    %v823 = vsel %vm710, %v784, 0.0
    %v824 = vadd.f32 %v822, %v823
    %v825 = vsel %vm710, %v785, 0.0
    %v826 = vadd.f32 %v824, %v825
    %v827 = vsel %vm710, %v786, 0.0
    %v828 = vadd.f32 %v826, %v827
    %v829 = vsel %vm710, %v787, 0.0
    %v830 = vadd.f32 %v828, %v829
    %v831 = vsel %vm710, %v788, 0.0
    %v832 = vadd.f32 %v830, %v831
    %v833 = vsel %vm710, %v789, 0.0
    %v834 = vadd.f32 %v832, %v833
    %v835 = vsel %vm710, %v790, 0.0
    %v836 = vadd.f32 %v834, %v835
    %v837 = vsel %vm710, %v791, 0.0
    %v838 = vadd.f32 %v836, %v837
    %v839 = vsel %vm710, %v792, 0.0
    %v840 = vadd.f32 %v838, %v839
    %v841 = vsel %vm710, %v793, 0.0
    %v842 = vadd.f32 %v840, %v841
    %843 = vadd.xlane.f32.xlu0 %v842
    %v844 = vpop.xlane.xlu0 %843
    %v845 = vrot.slane %v844, 4
    %v846 = vadd.f32 %v844, %v845
    %v847 = vrot.slane %v846, 2
    %v848 = vadd.f32 %v846, %v847
    %v849 = vrot.slane %v848, 1
    %v850 = vadd.f32 %v848, %v849
    %s851 = vtos %v850
    %v852 = vrcp.pop 200.0
    %v853 = vmul.f32 %v566, %v852
    %s854 = smul.f32 %s768, %s768
    %s855 = ssub.f32 %s854, %s851
    %v856 = vstv %s855
    %v857 = vrcp.pop %v856
    %s858 = vtos %v857
    %s859 = smul.f32 %s768, %s858
    %v860 = vmul.f32 %v853, 2.0
    %v861 = vmul.f32 %v860, %v596
    %v862 = vsub.f32 %v651, %v861
    %v863 = vstv %s768
    %v864 = vmul.f32 %v863, %v853
    %v865 = vmul.f32 %v864, %v853
    %v866 = vadd.f32 %v862, %v865
    %v867 = vstv %s859
    %v868 = vmul.f32 %v867, %v866
    %v869 = vadd.f32 %v868, 0.001
    %v870 = vrsqrt.pop %v869
    %v871 = vmul.f32 %v869, %v870
    %vm872 = vcmp.eq.f32.partialorder %v869, inf
    %v873 = vsel %vm872, %v869, %v871
    %vm874 = vcmp.eq.f32.partialorder %v869, 0.0
    %v875 = vand.u32 %v869, 2147483648
    %v876 = vsel %vm874, %v875, %v873
    %v877 = vsub.f32 1.0, %v876
    %v878 = vmax.f32 %v877, 0.0
    %vm879 = vcmask 1040384
    %v880 = vsel %vm879, %v878, 0.0
    %881 = vadd.xlane.f32.xlu0 %v880
    %v882 = vpop.xlane.xlu0 %881
    %v883 = vrot.slane %v882, 4
    %v884 = vadd.f32 %v882, %v883
    %v885 = vrot.slane %v884, 2
    %v886 = vadd.f32 %v884, %v885
    %v887 = vrot.slane %v886, 1
    %v888 = vadd.f32 %v886, %v887
    %s889 = vtos %v888
    %v890 = vrcp.pop 128.0
    %s891 = vtos %v890
    %s892 = smul.f32 %s889, %s891
    %v893 = vmul.f32 %v459, %v459
    %v894 = vmul.f32 %v464, %v464
    %v895 = vmul.f32 %v469, %v469
    %v896 = vmul.f32 %v474, %v474
    %v897 = vmul.f32 %v479, %v479
    %v898 = vmul.f32 %v484, %v484
    %v899 = vmul.f32 %v489, %v489
    %v900 = vmul.f32 %v494, %v494
    %v901 = vmul.f32 %v499, %v499
    %v902 = vmul.f32 %v504, %v504
    %v903 = vmul.f32 %v509, %v509
    %v904 = vmul.f32 %v514, %v514
    %v905 = vmul.f32 %v519, %v519
    %v906 = vmul.f32 %v524, %v524
    %v907 = vmul.f32 %v529, %v529
    %v908 = vmul.f32 %v534, %v534
    %v909 = vadd.f32 %v893, %v894
    %v910 = vadd.f32 %v909, %v895
    %v911 = vadd.f32 %v910, %v896
    %v912 = vadd.f32 %v911, %v897
    %v913 = vadd.f32 %v912, %v898
    %v914 = vadd.f32 %v913, %v899
    %v915 = vadd.f32 %v914, %v900
    %v916 = vadd.f32 %v915, %v901
    %v917 = vadd.f32 %v916, %v902
    %v918 = vadd.f32 %v917, %v903
    %v919 = vadd.f32 %v918, %v904
    %v920 = vadd.f32 %v919, %v905
    %v921 = vadd.f32 %v920, %v906
    %v922 = vadd.f32 %v921, %v907
    %v923 = vadd.f32 %v922, %v908
    %924 = vadd.xlane.f32.xlu0 %v923
    %v925 = vpop.xlane.xlu0 %924
    %v926 = vrot.slane %v925, 4
    %v927 = vadd.f32 %v925, %v926
    %v928 = vrot.slane %v927, 2
    %v929 = vadd.f32 %v927, %v928
    %v930 = vrot.slane %v929, 1
    %v931 = vadd.f32 %v929, %v930
    %s932 = vtos %v931
    %933 = vmatprep.subr.mxu0 0.0
    %934 = vmatpush1.msra.mxu0 %v459
    %935 = vmatprep.subr.mxu0 0.0
    %936 = vmatpush1.msra.mxu0 %v464
    %937 = vmatprep.subr.mxu0 0.0
    %938 = vmatpush1.msra.mxu0 %v469
    %939 = vmatprep.subr.mxu0 0.0
    %940 = vmatpush1.msra.mxu0 %v474
    %941 = vmatprep.subr.mxu0 0.0
    %942 = vmatpush1.msra.mxu0 %v479
    %943 = vmatprep.subr.mxu0 0.0
    %944 = vmatpush1.msra.mxu0 %v484
    %945 = vmatprep.subr.mxu0 0.0
    %946 = vmatpush1.msra.mxu0 %v489
    %947 = vmatprep.subr.mxu0 0.0
    %948 = vmatpush1.msra.mxu0 %v494
    %949 = vmatprep.subr.mxu0 0.0
    %950 = vmatpush1.msra.mxu0 %v499
    %951 = vmatprep.subr.mxu0 0.0
    %952 = vmatpush1.msra.mxu0 %v504
    %953 = vmatprep.subr.mxu0 0.0
    %954 = vmatpush1.msra.mxu0 %v509
    %955 = vmatprep.subr.mxu0 0.0
    %956 = vmatpush1.msra.mxu0 %v514
    %957 = vmatprep.subr.mxu0 0.0
    %958 = vmatpush1.msra.mxu0 %v519
    %959 = vmatprep.subr.mxu0 0.0
    %960 = vmatpush1.msra.mxu0 %v524
    %961 = vmatprep.subr.mxu0 0.0
    %962 = vmatpush1.msra.mxu0 %v529
    %963 = vmatprep.subr.mxu0 0.0
    %964 = vmatpush1.msra.mxu0 %v534
    %965 = vmatprep.subr.mxu0 0.0
    %966 = vmatpush1.msra.mxu0 0.0
    %967 = vmatprep.subr.mxu0 0.0
    %968 = vmatpush1.msra.mxu0 0.0
    %969 = vmatprep.subr.mxu0 0.0
    %970 = vmatpush1.msra.mxu0 0.0
    %971 = vmatprep.subr.mxu0 0.0
    %972 = vmatpush1.msra.mxu0 0.0
    %973 = vmatprep.subr.mxu0 0.0
    %974 = vmatpush1.msra.mxu0 0.0
    %975 = vmatprep.subr.mxu0 0.0
    %976 = vmatpush1.msra.mxu0 0.0
    %977 = vmatprep.subr.mxu0 0.0
    %978 = vmatpush1.msra.mxu0 0.0
    %979 = vmatprep.subr.mxu0 0.0
    %980 = vmatpush1.msra.mxu0 0.0
    %981 = vmatprep.subr.mxu0 0.0
    %982 = vmatpush1.msra.mxu0 0.0
    %983 = vmatprep.subr.mxu0 0.0
    %984 = vmatpush1.msra.mxu0 0.0
    %985 = vmatprep.subr.mxu0 0.0
    %986 = vmatpush1.msra.mxu0 0.0
    %987 = vmatprep.subr.mxu0 0.0
    %988 = vmatpush1.msra.mxu0 0.0
    %989 = vmatprep.subr.mxu0 0.0
    %990 = vmatpush1.msra.mxu0 0.0
    %991 = vmatprep.subr.mxu0 0.0
    %992 = vmatpush1.msra.mxu0 0.0
    %993 = vmatprep.subr.mxu0 0.0
    %994 = vmatpush1.msra.mxu0 0.0
    %995 = vmatprep.subr.mxu0 0.0
    %996 = vmatpush1.msra.mxu0 0.0
    %997 = vmatprep.mubr.f32.mxu0 0.0
    %998 = vmatmul.mubr.f32.gmra.mrb[0].mxu0 %v853
    %v999 = vpop.f32.mrb[0].mxu0
    %v1000 = vadd.f32 0.0, %v999
    %v1001 = vpop.f32.mrb[0].mxu0
    %1002 = vdwg.mxu0
    %v1003 = vmul.f32 %v1000, %v853
    %v1004 = vsel %vm879, %v1003, 0.0
    %1005 = vadd.xlane.f32.xlu0 %v1004
    %v1006 = vpop.xlane.xlu0 %1005
    %v1007 = vrot.slane %v1006, 4
    %v1008 = vadd.f32 %v1006, %v1007
    %v1009 = vrot.slane %v1008, 2
    %v1010 = vadd.f32 %v1008, %v1009
    %v1011 = vrot.slane %v1010, 1
    %v1012 = vadd.f32 %v1010, %v1011
    %s1013 = vtos %v1012
    %v1014 = vmul.f32 %v853, %v853
    %v1015 = vsel %vm879, %v1014, 0.0
    %1016 = vadd.xlane.f32.xlu0 %v1015
    %v1017 = vpop.xlane.xlu0 %1016
    %v1018 = vrot.slane %v1017, 4
    %v1019 = vadd.f32 %v1017, %v1018
    %v1020 = vrot.slane %v1019, 2
    %v1021 = vadd.f32 %v1019, %v1020
    %v1022 = vrot.slane %v1021, 1
    %v1023 = vadd.f32 %v1021, %v1022
    %s1024 = vtos %v1023
    %s1025 = smul.f32 %s1013, 400.0
    %s1026 = ssub.f32 %s932, %s1025
    %s1027 = smul.f32 %s1024, 40000.0
    %s1028 = smul.f32 %s1027, %s1024
    %s1029 = sadd.f32 %s1026, %s1028
    %s1030 = smul.f32 %s1029, 0.0050251256
    %s1031 = smul.f32 %s1030, 0.0050251256
    %v1032 = vlaneseq
    %v1033 = vshrl.u32 %v1032, 7
    %v1034 = vadd.s32 %v1033, 8
    %v1035 = vadd.s32 %v1033, 16
    %v1036 = vadd.s32 %v1033, 24
    %v1037 = vadd.s32 %v1033, 32
    %v1038 = vadd.s32 %v1033, 40
    %v1039 = vadd.s32 %v1033, 48
    %v1040 = vadd.s32 %v1033, 56
    %v1041 = vadd.s32 %v1033, 64
    %v1042 = vadd.s32 %v1033, 72
    %v1043 = vadd.s32 %v1033, 80
    %v1044 = vadd.s32 %v1033, 88
    %v1045 = vadd.s32 %v1033, 96
    %v1046 = vadd.s32 %v1033, 104
    %v1047 = vadd.s32 %v1033, 112
    %v1048 = vadd.s32 %v1033, 120
    %v1049 = vlaneseq
    %v1050 = vand.u32 %v1049, 127
    %vm1051 = vcmp.eq.s32.totalorder %v1033, %v1050
    %vm1052 = vcmp.eq.s32.totalorder %v1034, %v1050
    %vm1053 = vcmp.eq.s32.totalorder %v1035, %v1050
    %vm1054 = vcmp.eq.s32.totalorder %v1036, %v1050
    %vm1055 = vcmp.eq.s32.totalorder %v1037, %v1050
    %vm1056 = vcmp.eq.s32.totalorder %v1038, %v1050
    %vm1057 = vcmp.eq.s32.totalorder %v1039, %v1050
    %vm1058 = vcmp.eq.s32.totalorder %v1040, %v1050
    %vm1059 = vcmp.eq.s32.totalorder %v1041, %v1050
    %vm1060 = vcmp.eq.s32.totalorder %v1042, %v1050
    %vm1061 = vcmp.eq.s32.totalorder %v1043, %v1050
    %vm1062 = vcmp.eq.s32.totalorder %v1044, %v1050
    %vm1063 = vcmp.eq.s32.totalorder %v1045, %v1050
    %vm1064 = vcmp.eq.s32.totalorder %v1046, %v1050
    %vm1065 = vcmp.eq.s32.totalorder %v1047, %v1050
    %vm1066 = vcmp.eq.s32.totalorder %v1048, %v1050
    %v1067 = vsel %vm1051, %v459, 0.0
    %v1068 = vsel %vm1052, %v464, 0.0
    %v1069 = vsel %vm1053, %v469, 0.0
    %v1070 = vsel %vm1054, %v474, 0.0
    %v1071 = vsel %vm1055, %v479, 0.0
    %v1072 = vsel %vm1056, %v484, 0.0
    %v1073 = vsel %vm1057, %v489, 0.0
    %v1074 = vsel %vm1058, %v494, 0.0
    %v1075 = vsel %vm1059, %v499, 0.0
    %v1076 = vsel %vm1060, %v504, 0.0
    %v1077 = vsel %vm1061, %v509, 0.0
    %v1078 = vsel %vm1062, %v514, 0.0
    %v1079 = vsel %vm1063, %v519, 0.0
    %v1080 = vsel %vm1064, %v524, 0.0
    %v1081 = vsel %vm1065, %v529, 0.0
    %v1082 = vsel %vm1066, %v534, 0.0
    %v1083 = vadd.f32 %v1067, %v1068
    %v1084 = vadd.f32 %v1083, %v1069
    %v1085 = vadd.f32 %v1084, %v1070
    %v1086 = vadd.f32 %v1085, %v1071
    %v1087 = vadd.f32 %v1086, %v1072
    %v1088 = vadd.f32 %v1087, %v1073
    %v1089 = vadd.f32 %v1088, %v1074
    %v1090 = vadd.f32 %v1089, %v1075
    %v1091 = vadd.f32 %v1090, %v1076
    %v1092 = vadd.f32 %v1091, %v1077
    %v1093 = vadd.f32 %v1092, %v1078
    %v1094 = vadd.f32 %v1093, %v1079
    %v1095 = vadd.f32 %v1094, %v1080
    %v1096 = vadd.f32 %v1095, %v1081
    %v1097 = vadd.f32 %v1096, %v1082
    %v1098 = vrot.slane %v1097, 4
    %v1099 = vadd.f32 %v1097, %v1098
    %v1100 = vrot.slane %v1099, 2
    %v1101 = vadd.f32 %v1099, %v1100
    %v1102 = vrot.slane %v1101, 1
    %v1103 = vadd.f32 %v1101, %v1102
    %v1104 = vmul.f32 %v853, 200.0
    %v1105 = vmul.f32 %v1104, %v853
    %v1106 = vsub.f32 %v1103, %v1105
    %v1107 = vmul.f32 %v1106, 0.0050251256
    %v1108 = vmul.f32 %v1107, %v1107
    %v1109 = vsel %vm879, %v1108, 0.0
    %1110 = vadd.xlane.f32.xlu0 %v1109
    %v1111 = vpop.xlane.xlu0 %1110
    %v1112 = vrot.slane %v1111, 4
    %v1113 = vadd.f32 %v1111, %v1112
    %v1114 = vrot.slane %v1113, 2
    %v1115 = vadd.f32 %v1113, %v1114
    %v1116 = vrot.slane %v1115, 1
    %v1117 = vadd.f32 %v1115, %v1116
    %s1118 = vtos %v1117
    %s1119 = ssub.f32 %s1031, %s1118
    %s1120 = smul.f32 %s1119, 2.0
    %v1121 = vrcp.pop 128.0
    %s1122 = vtos %v1121
    %s1123 = smul.f32 %s1120, %s1122
    %v1124 = vrcp.pop 25600.0
    %s1125 = vtos %v1124
    %s1126 = smul.f32 %s709, %s1125
    %s1127 = smul.f32 %s1126, 25.0
    %s1128 = smul.f32 %s892, 25.0
    %s1129 = sadd.f32 %s1127, %s1128
    %s1130 = sadd.f32 %s1129, %s1123
    %s1131 = scalar_lea.smem [#allocation5], 0
    %1132 = sst [smem:[%s1131]] %s1130
    // Predicated region
    $region18: #{tpu_custom_call.1} parent=1 // pred_check
      _
    $region19: #{tpu_custom_call.1} parent=1 // pred_check_branch
      %1134 = sbr.rel (0) target = $region21
    $region20: #{tpu_custom_call.1} parent=1 // pred_region
      %s1136 = ssub.s32 16, 16
      %1137 = vsyncadd [#allocation4], %s1136
      %1140 = dma.smem_to_hbm [#allocation5], 16, %s3, [#allocation4]
    $region21: #{tpu_custom_call.1} parent=1 // pred_fallthru
      _
    // Predicated region
    $region22: #{tpu_custom_call.1} parent=1 // pred_check
      _
    $region23: #{tpu_custom_call.1} parent=1 // pred_check_branch
      %1142 = sbr.rel (0) target = $region25
    $region24: #{tpu_custom_call.1} parent=1 // pred_region
      %1143 = dma.done [#allocation4], 16
    $region25: #{tpu_custom_call.1} parent=1 // pred_fallthru
      _
    %1144 = sfence
    %1145 = vsyncpa [#allocation3], 1
    %1146 = vsyncpa [#allocation4], 1

</llo_original>
